<compile_context>
chip_gen: v7x
topology: tpu7x:2x2x1
jax: 0.10.0
libtpu: 0.0.40
codegen_flags: <defaults>
</compile_context>

<pallas_src>
import jax
import jax.numpy as jnp
from jax.experimental import pallas as pl
from jax.experimental.pallas import tpu as pltpu


def _identity_kernel(x_ref, o_ref):
    # Pure copy: one vld -> vst stream per vreg. The binding resource is the
    # HBM DMA, so the body stays trivial (no scratch, no manual DMA).
    o_ref[...] = x_ref[...]


def _packed_sublanes(dtype) -> int:
    # Sub-32-bit dtypes pack along sublanes: 8 rows (32-bit), 16 (16-bit),
    # 32 (8-bit). Keeping row tiles a multiple of this avoids relayouts.
    bits = jnp.dtype(dtype).itemsize * 8
    return max(8, 256 // max(bits, 1))


# ~2 MiB per block: big enough to amortize per-grid-step overhead and sit near
# the HBM roofline, small enough that 4 double-buffered blocks fit comfortably
# in scoped VMEM on v5e / v6e / v7x.
_TARGET_BLOCK_BYTES = 2 * 1024 * 1024


def _row_blocked_copy(x2d):
    """Copy a 2-D array with large, lane-dense blocks along the row axis."""
    rows, width = x2d.shape
    itemsize = jnp.dtype(x2d.dtype).itemsize
    sub = _packed_sublanes(x2d.dtype)

    tile_rows = max(sub, (_TARGET_BLOCK_BYTES // max(width * itemsize, 1)) // sub * sub)
    if tile_rows >= rows:
        tile_rows = rows  # single row-block == full dim (always a legal block)
    grid = (pl.cdiv(rows, tile_rows),)

    return pl.pallas_call(
        _identity_kernel,
        out_shape=jax.ShapeDtypeStruct((rows, width), x2d.dtype),
        grid_spec=pltpu.PrefetchScalarGridSpec(
            num_scalar_prefetch=0,
            grid=grid,
            in_specs=[pl.BlockSpec((tile_rows, width), lambda i: (i, 0))],
            out_specs=pl.BlockSpec((tile_rows, width), lambda i: (i, 0)),
        ),
        compiler_params=pltpu.CompilerParams(
            # 1-D parallel grid -> sharded across the 2 TensorCores on v7x.
            dimension_semantics=("parallel",),
            # Headroom above v5e's 16 MiB default scoped-VMEM limit.
            vmem_limit_bytes=32 * 1024 * 1024,
        ),
    )(x2d)


def identity(x):
    """Pallas Identity: returns x unchanged (same shape, dtype, values)."""
    if x.size == 0:
        return x

    orig_shape = x.shape
    n = x.size

    if n % 128 == 0:
        # Fast path: free reshape to a wide, lane-dense 2-D view. Pick the
        # largest width (multiple of 128) dividing n so stores are unmasked
        # full-width vst and DMAs are large.
        width = 128
        for cand in (4096, 2048, 1024, 512, 256):
            if n % cand == 0:
                width = cand
                break
        x2d = x.reshape(n // width, width)
    else:
        # Remainder path: keep the trailing axis as the (full) last block dim
        # so no padding copy is ever materialized.
        if x.ndim >= 2:
            x2d = x.reshape(-1, orig_shape[-1])
        else:
            x2d = x.reshape(1, n)
        # TODO(synk): a huge 1-D array with a non-128-multiple length would
        # become a single oversized block here; not reachable for this module.

    out2d = _row_blocked_copy(x2d)
    return out2d.reshape(orig_shape)


if __name__ == "__main__":
    key = jax.random.PRNGKey(0)
    x = jax.random.normal(key, (2, 4, 16, 16), dtype=jnp.float32)

    y = identity(x)
    jax.block_until_ready(y)

    assert y.shape == x.shape, (y.shape, x.shape)
    assert y.dtype == x.dtype, (y.dtype, x.dtype)
    assert bool(jnp.all(y == x)), "Identity output mismatch (fast path)"

    # Exercise the non-128-multiple remainder path with a tiny odd shape.
    x_odd = jax.random.normal(jax.random.PRNGKey(0), (3, 5, 7), dtype=jnp.float32)
    y_odd = identity(x_odd)
    jax.block_until_ready(y_odd)
    assert y_odd.shape == x_odd.shape
    assert bool(jnp.all(y_odd == x_odd)), "Identity output mismatch (odd path)"

    print("KERNEL_OK")
</pallas_src>

<mosaic_0001>
module attributes {stable_mosaic.version = 11 : i64} {
  func.func @_identity_kernel(%arg0: i32, %arg1: memref<1x2048xf32, #tpu.memory_space<vmem>>, %arg2: memref<1x2048xf32, #tpu.memory_space<vmem>>) attributes {dimension_semantics = [#tpu.dimension_semantics<parallel>], iteration_bounds = array<i64: 1>, scalar_prefetch = 0 : i64, scratch_operands = 0 : i64, tpu.core_type = #tpu.core_type<tc>, window_params = [{transform_indices = @transform_0, window_bounds = array<i64: 1, 2048>}, {transform_indices = @transform_1, window_bounds = array<i64: 1, 2048>}]} {
    %c0 = arith.constant 0 : index
    %c0_0 = arith.constant 0 : index
    %0 = vector.load %arg1[%c0, %c0_0] : memref<1x2048xf32, #tpu.memory_space<vmem>>, vector<1x2048xf32>
    %c0_1 = arith.constant 0 : index
    %c0_2 = arith.constant 0 : index
    %1 = vector.load %arg2[%c0_1, %c0_2] : memref<1x2048xf32, #tpu.memory_space<vmem>>, vector<1x2048xf32>
    tpu.vector_store %arg2[%c0_1, %c0_2], %0 {strides = array<i32>} : memref<1x2048xf32, #tpu.memory_space<vmem>>, vector<1x2048xf32>,
    return
  }
  func.func @transform_0(%arg0: i32) -> (i32, i32) {
    %c0_i32 = arith.constant 0 : i32
    %c0_i32_0 = arith.constant 0 : i32
    return %arg0, %c0_i32 : i32, i32
  }
  func.func @transform_1(%arg0: i32) -> (i32, i32) {
    %c0_i32 = arith.constant 0 : i32
    %c0_i32_0 = arith.constant 0 : i32
    return %arg0, %c0_i32 : i32, i32
  }
}

</mosaic_0001>

<llo_original>
// kernel: tpu_custom_call.1
$region0: #{tpu_custom_call.1}
  #allocation0 [shape = 'u32[]', space=smem, size = 0x4, offset = 0x4, fixed_abs, tag = 'smem constant byte address 0x4 - core index']
  #allocation1 [shape = 'u32[144,128]{1,0:T(1,128)}', space=vmem, size = 0x12000, scoped, tag = 'internal scratch']
  %s0 = inlined_call_operand.hbm [shape: f32[1,2048], index: 0, kind: input, shape index: {}]
  %s1 = inlined_call_operand.hbm [shape: f32[1,2048], index: 1, kind: output, shape index: {}]
  %s2 = sld [smem:[#allocation0]]
  $region18: #{tpu_custom_call.1} parent=0
    _
  %s4 = ssub.s32 1, %s2
  %s5 = scalar_select 0, %s4, %s2
  $region1: #{tpu_custom_call.1} parent=0
    #allocation2 [shape = 'u8[8192]{0}', space=vmem, size = 0x2000, scoped, tag = 'input window, operand 0, single buffered']
    #allocation3 [shape = 's32[1]{0}', space=sflag, size = 0x4, scoped, tag = 'scoped memory for tpu_custom_call.1']
    #allocation4 [shape = 's32[1]{0}', space=sflag, size = 0x4, scoped, tag = 'scoped memory for tpu_custom_call.1']
    #allocation5 [shape = 'u8[8192]{0}', space=vmem, size = 0x2000, scoped, tag = 'output window, operand 0, single buffered']
    %6 = vsyncpa [#allocation3], 0
    %7 = vsyncpa [#allocation4], 0
    // Predicated region
    $region2: #{tpu_custom_call.1} parent=1 // pred_check
      _
    $region3: #{tpu_custom_call.1} parent=1 // pred_check_branch
      %9 = sbr.rel (0) target = $region5
    $region4: #{tpu_custom_call.1} parent=1 // pred_region
      %s11 = ssub.s32 256, 256
      %12 = vsyncadd [#allocation3], %s11
      %s14 = sshll.u32 [#allocation2], 4
      %s15 = int_to_ptr.vmem [resolvable:$true] %s14
      %17 = dma.hbm_to_vmem [thread:$0]  %s0, 256, %s15, [#allocation3]
    $region5: #{tpu_custom_call.1} parent=1 // pred_fallthru
      _
    // Predicated region
    $region6: #{tpu_custom_call.1} parent=1 // pred_check
      _
    $region7: #{tpu_custom_call.1} parent=1 // pred_check_branch
      %19 = sbr.rel (0) target = $region9
    $region8: #{tpu_custom_call.1} parent=1 // pred_region
      %20 = dma.done [#allocation3], 256
    $region9: #{tpu_custom_call.1} parent=1 // pred_fallthru
      _
    %v21 = vld [vmem:[#allocation2] sm:$0xff]
    %v22 = vld [vmem:[#allocation2 + $0x8] sm:$0xff]
    %23 = vst [vmem:[#allocation5] sm:$0xff] %v21
    %24 = vst [vmem:[#allocation5 + $0x8] sm:$0xff] %v22
    // Predicated region
    $region10: #{tpu_custom_call.1} parent=1 // pred_check
      _
    $region11: #{tpu_custom_call.1} parent=1 // pred_check_branch
      %26 = sbr.rel (0) target = $region13
    $region12: #{tpu_custom_call.1} parent=1 // pred_region
      %s28 = ssub.s32 256, 256
      %29 = vsyncadd [#allocation4], %s28
      %s31 = sshll.u32 [#allocation5], 4
      %s32 = int_to_ptr.vmem [resolvable:$true] %s31
      %34 = dma.vmem_to_hbm [thread:$0]  %s32, 256, %s1, [#allocation4]
    $region13: #{tpu_custom_call.1} parent=1 // pred_fallthru
      _
    // Predicated region
    $region14: #{tpu_custom_call.1} parent=1 // pred_check
      _
    $region15: #{tpu_custom_call.1} parent=1 // pred_check_branch
      %36 = sbr.rel (0) target = $region17
    $region16: #{tpu_custom_call.1} parent=1 // pred_region
      %37 = dma.done [#allocation4], 256
    $region17: #{tpu_custom_call.1} parent=1 // pred_fallthru
      _
    %38 = vsyncpa [#allocation3], 1
    %39 = vsyncpa [#allocation4], 1

</llo_original>
